<compile_context>
chip_gen: v5e
topology: v5e:2x2
jax: 0.10.0
libtpu: 0.0.40
codegen_flags: <defaults>
</compile_context>

<pallas_src>
import functools

import jax
import jax.numpy as jnp
from jax import lax
from jax.experimental import pallas as pl
from jax.experimental.pallas import tpu as pltpu


_LANE = 128          # pad every feature dim to a multiple of the lane width
_BF16_SUBLANE = 16   # bf16 packs 16 rows per sublane group -> pad batch to 16
_BATCH_TILE = 512    # rows per grid step when a batch grid is used (>=512: ~85% of roofline)
_NEG_BIG = -1e30     # softmax padding mask (exp underflows to exactly 0)


def _round_up(n: int, m: int) -> int:
    return ((n + m - 1) // m) * m


def _vmem_budget(param_bytes: int, act_bytes: int) -> int:
    """Generation-aware VMEM budget (75% of physical, min 4 MiB)."""
    try:
        cap = int(getattr(pltpu.get_tpu_info(), "vmem_capacity_bytes",
                          64 * 1024 * 1024))
    except Exception:
        cap = 64 * 1024 * 1024           # conservative: v7x per-TC physical VMEM
    cap = (3 * cap) // 4
    # weights single-buffered + activations (double-buffered under a grid)
    want = 2 * param_bytes + 4 * act_bytes
    return max(4 * 1024 * 1024, min(cap, want))


def _fused_mlp_kernel(x_ref, *refs, activations, leaky_slope, softmax_dim,
                      valid_batch, valid_outs):
    """Entire MLP forward fused into one kernel (activations never leave VMEM).

    refs = (w0, b0, w1, b1, ..., w_{L-1}, b_{L-1}, o_ref)
      wi : (in_pad_i, out_pad_i) bf16  -- already transposed to (in, out)
      bi : (1, out_pad_i)        f32
    """
    n_layers = len(activations)
    o_ref = refs[2 * n_layers]

    h = x_ref[...]                                             # bf16 (B_tile, in_pad)

    for i, act in enumerate(activations):
        w = refs[2 * i][...]                                   # (in_pad, out_pad) bf16
        b = refs[2 * i + 1][...]                               # (1, out_pad)      f32

        # MXU matmul: bf16 operands, f32 accumulation; weights stored (K, N).
        s = jnp.dot(h, w, preferred_element_type=jnp.float32) + b

        # Elementwise / activation math in f32 (safe on v5e's VPU too).
        if act == "relu":
            y = jnp.maximum(s, 0.0)
        elif act == "leaky_relu":
            y = jnp.where(s >= 0.0, s, leaky_slope * s)
        elif act == "sigmoid":
            # EUP reciprocal slot; precision is ample for a sigmoid activation.
            y = pl.reciprocal(1.0 + jnp.exp(-s), approx=True)
        elif act == "tanh":
            y = jnp.tanh(s)
        elif act == "softmax":
            axis = softmax_dim if softmax_dim >= 0 else softmax_dim + 2
            valid = valid_batch if axis == 0 else valid_outs[i]
            if valid is not None and valid < s.shape[axis]:
                # Mask zero-padded rows/cols so they don't pollute the sum.
                idx = lax.broadcasted_iota(jnp.int32, s.shape, axis)
                s = jnp.where(idx < valid, s, _NEG_BIG)
            m = jnp.max(s, axis=axis, keepdims=True)
            e = jnp.exp(s - m)
            denom = jnp.sum(e, axis=axis, keepdims=True)
            # Exact divide: probabilities sum to 1 at f32 precision (the approx
            # reciprocal previously broke normalization beyond 2e-3).
            y = e / denom
        elif act == "none":
            y = s
        else:
            raise ValueError(f"Activation function {act} not found")

        if i + 1 < n_layers:
            h = y.astype(jnp.bfloat16)                         # feed next MXU matmul
        else:
            o_ref[...] = y.astype(o_ref.dtype)


class PerceptronPallas:
    """JAX/Pallas mirror of the PyTorch Perceptron (stack of CustomLayer)."""

    def __init__(self, input_size, hidden_size, output_size,
                 hidden_activation="relu", output_activation="softmax",
                 leaky_slope=0.01, softmax_dim=0, key=None):
        if key is None:
            key = jax.random.PRNGKey(0)
        layer_sizes = [input_size] + list(hidden_size) + [output_size]
        self.activations = ([hidden_activation] * (len(layer_sizes) - 2)
                            + [output_activation])
        self.leaky_slope = leaky_slope
        self.softmax_dim = softmax_dim
        self.input_size = input_size
        self.output_size = output_size
        self.layer_out_sizes = layer_sizes[1:]

        self.in_pads = [_round_up(s, _LANE) for s in layer_sizes[:-1]]
        self.out_pads = [_round_up(s, _LANE) for s in layer_sizes[1:]]

        # [(w (in_pad, out_pad) bf16, b (1, out_pad) f32), ...]
        self.params = []
        for i, act in enumerate(self.activations):
            in_sz, out_sz = layer_sizes[i], layer_sizes[i + 1]
            key, wkey = jax.random.split(key)
            # Matches Layer.__init__: He-style scale for relu/leaky_relu, else 1/sqrt(in).
            if act in ("relu", "leaky_relu"):
                scale = jnp.sqrt(2.0 / in_sz)
            else:
                scale = jnp.sqrt(1.0 / in_sz)
            w = jax.random.normal(wkey, (out_sz, in_sz), dtype=jnp.float32) * scale
            b = jnp.zeros((out_sz,), dtype=jnp.float32)
            # Pre-transpose once to (in, out), zero-pad feature dims to lane
            # multiples, store matmul operands in bf16 (accumulate f32 in-kernel).
            w_t = jnp.zeros((self.in_pads[i], self.out_pads[i]), jnp.float32)
            w_t = w_t.at[:in_sz, :out_sz].set(w.T)
            b_p = jnp.zeros((1, self.out_pads[i]), jnp.float32)
            b_p = b_p.at[0, :out_sz].set(b)
            self.params.append((w_t.astype(jnp.bfloat16), b_p))

        self._flat_params = tuple(p for wb in self.params for p in wb)
        # Whole-batch softmax needed iff some layer softmaxes over the batch axis.
        self._needs_whole_batch = (any(a == "softmax" for a in self.activations)
                                   and self.softmax_dim in (0, -2))
        # Jit the full pad -> pallas_call -> slice pipeline (biggest end-to-end
        # win at small sizes: fuses padding/slicing, drops per-call dispatch).
        self._jit_forward = jax.jit(self._forward_impl)

    def __call__(self, x):
        return self._jit_forward(x, self._flat_params)

    def _forward_impl(self, x, flat_params):
        batch = x.shape[0]
        in_pad = self.in_pads[0]
        out_pad = self.out_pads[-1]
        n_layers = len(self.activations)

        batch_pad16 = _round_up(batch, _BF16_SUBLANE)
        use_grid = (not self._needs_whole_batch) and batch_pad16 > _BATCH_TILE
        if use_grid:
            tile = _BATCH_TILE
            batch_pad = _round_up(batch, tile)
        else:
            tile = batch_pad = batch_pad16

        # Pad the input directly in bf16 (half the HBM->VMEM bytes, no in-kernel cast).
        x_p = jnp.zeros((batch_pad, in_pad), jnp.bfloat16)
        x_p = x_p.at[:batch, :x.shape[1]].set(x.astype(jnp.bfloat16))

        kernel = functools.partial(
            _fused_mlp_kernel,
            activations=tuple(self.activations),
            leaky_slope=self.leaky_slope,
            softmax_dim=self.softmax_dim,
            valid_batch=(batch if not use_grid else None),
            valid_outs=tuple(self.layer_out_sizes),
        )

        param_bytes = sum(int(p.size) * p.dtype.itemsize for p in flat_params)
        act_bytes = tile * in_pad * 2 + sum(tile * op * 4 for op in self.out_pads)
        vmem_limit = _vmem_budget(param_bytes, act_bytes)

        if use_grid:
            # Batch grid: "parallel" axis shards across TCs on v7x and enables
            # double-buffered activation DMA; weights stay resident (constant
            # index_map -> fetched once, never re-DMA'd).
            in_specs = [pl.BlockSpec((tile, in_pad), lambda i: (i, 0))]
            for (w, b) in self.params:
                in_specs.append(pl.BlockSpec(w.shape, lambda i: (0, 0)))
                in_specs.append(pl.BlockSpec(b.shape, lambda i: (0, 0)))
            out = pl.pallas_call(
                kernel,
                out_shape=jax.ShapeDtypeStruct((batch_pad, out_pad), jnp.float32),
                grid=(batch_pad // tile,),
                in_specs=in_specs,
                out_specs=pl.BlockSpec((tile, out_pad), lambda i: (i, 0)),
                compiler_params=pltpu.CompilerParams(
                    dimension_semantics=("parallel",),
                    vmem_limit_bytes=vmem_limit),
            )(x_p, *flat_params)
        else:
            # Whole batch in one block (required when softmax spans the batch axis).
            # TODO(synk): a two-pass column max/sum would let dim=0 softmax use the
            # batch grid too; not needed at these sizes.
            vmem_spec = pl.BlockSpec(memory_space=pltpu.MemorySpace.VMEM)
            out = pl.pallas_call(
                kernel,
                out_shape=jax.ShapeDtypeStruct((batch_pad, out_pad), jnp.float32),
                in_specs=[vmem_spec] * (1 + 2 * n_layers),
                out_specs=vmem_spec,
                compiler_params=pltpu.CompilerParams(vmem_limit_bytes=vmem_limit),
            )(x_p, *flat_params)

        return out[:batch, :self.output_size]


def _reference_forward(model, x):
    """Pure-JAX reference replicating the kernel's bf16-operand arithmetic."""
    sizes_in = [model.input_size] + list(model.layer_out_sizes[:-1])
    h = x
    for i, ((w_p, b_p), act) in enumerate(zip(model.params, model.activations)):
        in_sz, out_sz = sizes_in[i], model.layer_out_sizes[i]
        w = w_p[:in_sz, :out_sz].astype(jnp.float32)
        b = b_p[0, :out_sz]
        s = jnp.dot(h.astype(jnp.bfloat16).astype(jnp.float32), w) + b
        if act == "relu":
            h = jnp.maximum(s, 0.0)
        elif act == "leaky_relu":
            h = jnp.where(s >= 0.0, s, model.leaky_slope * s)
        elif act == "sigmoid":
            h = 1.0 / (1.0 + jnp.exp(-s))
        elif act == "tanh":
            h = jnp.tanh(s)
        elif act == "softmax":
            h = jax.nn.softmax(s, axis=model.softmax_dim)
        else:
            h = s
    return h


if __name__ == "__main__":
    key = jax.random.PRNGKey(0)
    key, xkey1, pkey1, xkey2, pkey2 = jax.random.split(key, 5)

    # --- Test 1: whole-batch path (final softmax over dim=0 = batch axis) ---
    batch, input_size, hidden_size, output_size = 8, 32, [32], 16
    x1 = jax.random.normal(xkey1, (batch, input_size), dtype=jnp.float32)
    m1 = PerceptronPallas(input_size, hidden_size, output_size,
                          hidden_activation="relu", output_activation="softmax",
                          leaky_slope=0.01, softmax_dim=0, key=pkey1)
    out1 = jax.block_until_ready(m1(x1))
    assert out1.shape == (batch, output_size)
    assert bool(jnp.all(jnp.isfinite(out1)))
    # exact-divide softmax over dim=0 -> columns sum to 1 at f32 precision
    assert bool(jnp.allclose(jnp.sum(out1, axis=0), 1.0, atol=1e-3))
    assert bool(jnp.allclose(out1, _reference_forward(m1, x1), atol=2e-2))

    # --- Test 2: batch-grid ("parallel") path: softmax over features, batch > tile ---
    batch2, in2, hid2, outsz2 = 1024, 64, [64], 32
    x2 = jax.random.normal(xkey2, (batch2, in2), dtype=jnp.float32)
    m2 = PerceptronPallas(in2, hid2, outsz2,
                          hidden_activation="tanh", output_activation="softmax",
                          leaky_slope=0.01, softmax_dim=1, key=pkey2)
    out2 = jax.block_until_ready(m2(x2))
    assert out2.shape == (batch2, outsz2)
    assert bool(jnp.all(jnp.isfinite(out2)))
    assert bool(jnp.allclose(jnp.sum(out2, axis=1), 1.0, atol=1e-3))
    assert bool(jnp.allclose(out2, _reference_forward(m2, x2), atol=2e-2))

    print("KERNEL_OK")
</pallas_src>

<mosaic_0001>
module attributes {stable_mosaic.version = 11 : i64} {
  func.func @_fused_mlp_kernel(%arg0: memref<16x128xbf16, #tpu.memory_space<vmem>>, %arg1: memref<128x128xbf16, #tpu.memory_space<vmem>>, %arg2: memref<1x128xf32, #tpu.memory_space<vmem>>, %arg3: memref<128x128xbf16, #tpu.memory_space<vmem>>, %arg4: memref<1x128xf32, #tpu.memory_space<vmem>>, %arg5: memref<16x128xf32, #tpu.memory_space<vmem>>) attributes {dimension_semantics = [], scalar_prefetch = 0 : i64, scratch_operands = 0 : i64, tpu.core_type = #tpu.core_type<tc>} {
    %c0 = arith.constant 0 : index
    %c0_0 = arith.constant 0 : index
    %0 = vector.load %arg0[%c0, %c0_0] : memref<16x128xbf16, #tpu.memory_space<vmem>>, vector<16x128xbf16>
    %c0_1 = arith.constant 0 : index
    %c0_2 = arith.constant 0 : index
    %1 = vector.load %arg1[%c0_1, %c0_2] : memref<128x128xbf16, #tpu.memory_space<vmem>>, vector<128x128xbf16>
    %c0_3 = arith.constant 0 : index
    %c0_4 = arith.constant 0 : index
    %2 = vector.load %arg2[%c0_3, %c0_4] : memref<1x128xf32, #tpu.memory_space<vmem>>, vector<1x128xf32>
    %cst = arith.constant dense<0.000000e+00> : vector<16x128xf32>
    %3 = tpu.matmul %0, %1, %cst {dimension_numbers = #tpu.dot_dimension_numbers<[1], [0], [0], [1], [0, 0, 1, 1], [], []>} : vector<16x128xbf16>, vector<128x128xbf16>, vector<16x128xf32> -> vector<16x128xf32>
    %4 = vector.broadcast %2 : vector<1x128xf32> to vector<16x128xf32>
    %5 = arith.addf %3, %4 : vector<16x128xf32>
    %cst_5 = arith.constant 0.000000e+00 : f32
    %6 = vector.broadcast %cst_5 : f32 to vector<16x128xf32>
    %7 = arith.maximumf %5, %6 : vector<16x128xf32>
    %8 = arith.truncf %7 : vector<16x128xf32> to vector<16x128xbf16>
    %c0_6 = arith.constant 0 : index
    %c0_7 = arith.constant 0 : index
    %9 = vector.load %arg3[%c0_6, %c0_7] : memref<128x128xbf16, #tpu.memory_space<vmem>>, vector<128x128xbf16>
    %c0_8 = arith.constant 0 : index
    %c0_9 = arith.constant 0 : index
    %10 = vector.load %arg4[%c0_8, %c0_9] : memref<1x128xf32, #tpu.memory_space<vmem>>, vector<1x128xf32>
    %cst_10 = arith.constant dense<0.000000e+00> : vector<16x128xf32>
    %11 = tpu.matmul %8, %9, %cst_10 {dimension_numbers = #tpu.dot_dimension_numbers<[1], [0], [0], [1], [0, 0, 1, 1], [], []>} : vector<16x128xbf16>, vector<128x128xbf16>, vector<16x128xf32> -> vector<16x128xf32>
    %12 = vector.broadcast %10 : vector<1x128xf32> to vector<16x128xf32>
    %13 = arith.addf %11, %12 : vector<16x128xf32>
    %14 = tpu.iota {dimensions = array<i32: 0>} : vector<16x128xi32>
    %c8_i32 = arith.constant 8 : i32
    %15 = vector.broadcast %c8_i32 : i32 to vector<16x128xi32>
    %16 = arith.cmpi slt, %14, %15 : vector<16x128xi32>
    %cst_11 = arith.constant -1.000000e+30 : f32
    %17 = vector.broadcast %cst_11 : f32 to vector<16x128xf32>
    %18 = arith.select %16, %13, %17 : vector<16x128xi1>, vector<16x128xf32>
    %cst_12 = arith.constant dense<0xFF800000> : vector<128xf32>
    %19 = vector.multi_reduction <maximumf>, %18, %cst_12 [0] : vector<16x128xf32> to vector<128xf32>
    %20 = vector.shape_cast %19 : vector<128xf32> to vector<1x128xf32>
    %21 = vector.broadcast %20 : vector<1x128xf32> to vector<16x128xf32>
    %22 = arith.subf %18, %21 : vector<16x128xf32>
    %23 = math.exp %22 : vector<16x128xf32>
    %cst_13 = arith.constant dense<0.000000e+00> : vector<128xf32>
    %24 = vector.multi_reduction <add>, %23, %cst_13 [0] : vector<16x128xf32> to vector<128xf32>
    %25 = vector.shape_cast %24 : vector<128xf32> to vector<1x128xf32>
    %26 = vector.broadcast %25 : vector<1x128xf32> to vector<16x128xf32>
    %27 = arith.divf %23, %26 : vector<16x128xf32>
    %c0_14 = arith.constant 0 : index
    %c0_15 = arith.constant 0 : index
    %28 = vector.load %arg5[%c0_14, %c0_15] : memref<16x128xf32, #tpu.memory_space<vmem>>, vector<16x128xf32>
    tpu.vector_store %arg5[%c0_14, %c0_15], %27 {strides = array<i32>} : memref<16x128xf32, #tpu.memory_space<vmem>>, vector<16x128xf32>,
    return
  }
}

</mosaic_0001>

<llo_original>
// kernel: _forward_impl.1
$region0: #{_forward_impl.1}
  #allocation0 [shape = 'u32[]', space=smem, size = 0x4, offset = 0x4, fixed_abs, tag = 'smem constant byte address 0x4 - core index']
  #allocation1 [shape = 'u32[72,128]{1,0:T(1,128)}', space=vmem, size = 0x9000, scoped, tag = 'internal scratch']
  %s0 = inlined_call_operand.vmem [shape: bf16[16,128], index: 0, kind: input, shape index: {}]
  %s1 = inlined_call_operand.hbm [shape: bf16[128,128], index: 1, kind: input, shape index: {}]
  %s2 = inlined_call_operand.vmem [shape: f32[1,128], index: 2, kind: input, shape index: {}]
  %s3 = inlined_call_operand.hbm [shape: bf16[128,128], index: 3, kind: input, shape index: {}]
  %s4 = inlined_call_operand.vmem [shape: f32[1,128], index: 4, kind: input, shape index: {}]
  %s5 = inlined_call_operand.vmem [shape: f32[16,128], index: 5, kind: output, shape index: {}]
  %s6 = sld [smem:[#allocation0]]
  $region38: #{_forward_impl.1} parent=0
    _
  %s8 = ssub.s32 1, %s6
  %s9 = scalar_select 0, %s8, %s6
  $region1: #{_forward_impl.1} parent=0
    #allocation2 [shape = 'u8[32768]{0}', space=vmem, size = 0x8000, scoped, tag = 'input window, operand 1, single buffered']
    #allocation3 [shape = 's32[1]{0}', space=sflag, size = 0x4, scoped, tag = 'scoped memory for _forward_impl.1']
    #allocation4 [shape = 'u8[32768]{0}', space=vmem, size = 0x8000, scoped, tag = 'input window, operand 3, single buffered']
    #allocation5 [shape = 's32[1]{0}', space=sflag, size = 0x4, scoped, tag = 'scoped memory for _forward_impl.1']
    %10 = vsyncpa [#allocation3], 0
    %11 = vsyncpa [#allocation5], 0
    // Predicated region
    $region2: #{_forward_impl.1} parent=1 // pred_check
      _
    $region3: #{_forward_impl.1} parent=1 // pred_check_branch
      %13 = sbr.rel (0) target = $region5
    $region4: #{_forward_impl.1} parent=1 // pred_region
      _
    $region5: #{_forward_impl.1} parent=1 // pred_fallthru
      _
    // Predicated region
    $region6: #{_forward_impl.1} parent=1 // pred_check
      _
    $region7: #{_forward_impl.1} parent=1 // pred_check_branch
      %15 = sbr.rel (0) target = $region9
    $region8: #{_forward_impl.1} parent=1 // pred_region
      %17 = vsyncadd [#allocation3], 0
      %s18 = sshll.u32 %s1, 4
      %s19 = int_to_ptr.hbm [resolvable:$true] %s18
      %s20 = sshll.u32 [#allocation2], 4
      %s21 = int_to_ptr.vmem [resolvable:$true] %s20
      %26 = dma.hbm_to_vmem [thread:$0]  %s19, 1024, %s21, [#allocation3], 64, 64, 4
    $region9: #{_forward_impl.1} parent=1 // pred_fallthru
      _
    // Predicated region
    $region10: #{_forward_impl.1} parent=1 // pred_check
      _
    $region11: #{_forward_impl.1} parent=1 // pred_check_branch
      %28 = sbr.rel (0) target = $region13
    $region12: #{_forward_impl.1} parent=1 // pred_region
      _
    $region13: #{_forward_impl.1} parent=1 // pred_fallthru
      _
    // Predicated region
    $region14: #{_forward_impl.1} parent=1 // pred_check
      _
    $region15: #{_forward_impl.1} parent=1 // pred_check_branch
      %30 = sbr.rel (0) target = $region17
    $region16: #{_forward_impl.1} parent=1 // pred_region
      %32 = vsyncadd [#allocation5], 0
      %s33 = sshll.u32 %s3, 4
      %s34 = int_to_ptr.hbm [resolvable:$true] %s33
      %s35 = sshll.u32 [#allocation4], 4
      %s36 = int_to_ptr.vmem [resolvable:$true] %s35
      %41 = dma.hbm_to_vmem [thread:$0]  %s34, 1024, %s36, [#allocation5], 64, 64, 4
    $region17: #{_forward_impl.1} parent=1 // pred_fallthru
      _
    // Predicated region
    $region18: #{_forward_impl.1} parent=1 // pred_check
      _
    $region19: #{_forward_impl.1} parent=1 // pred_check_branch
      %43 = sbr.rel (0) target = $region21
    $region20: #{_forward_impl.1} parent=1 // pred_region
      _
    $region21: #{_forward_impl.1} parent=1 // pred_fallthru
      _
    // Predicated region
    $region22: #{_forward_impl.1} parent=1 // pred_check
      _
    $region23: #{_forward_impl.1} parent=1 // pred_check_branch
      %45 = sbr.rel (0) target = $region25
    $region24: #{_forward_impl.1} parent=1 // pred_region
      %47 = dma.done [#allocation3], 1024
    $region25: #{_forward_impl.1} parent=1 // pred_fallthru
      _
    // Predicated region
    $region26: #{_forward_impl.1} parent=1 // pred_check
      _
    $region27: #{_forward_impl.1} parent=1 // pred_check_branch
      %49 = sbr.rel (0) target = $region29
    $region28: #{_forward_impl.1} parent=1 // pred_region
      %51 = dma.done [#allocation5], 1024
    $region29: #{_forward_impl.1} parent=1 // pred_fallthru
      _
    %v52 = vld [vmem:[%s0] sm:$0xf]
    %v53 = vld [vmem:[%s0 + $0x4] sm:$0xf]
    %v54 = vld [vmem:[#allocation2] sm:$0xf]
    %v55 = vld [vmem:[#allocation2 + $0x4] sm:$0xf]
    %v56 = vld [vmem:[#allocation2 + $0x8] sm:$0xf]
    %v57 = vld [vmem:[#allocation2 + $0xc] sm:$0xf]
    %v58 = vld [vmem:[#allocation2 + $0x10] sm:$0xf]
    %v59 = vld [vmem:[#allocation2 + $0x14] sm:$0xf]
    %v60 = vld [vmem:[#allocation2 + $0x18] sm:$0xf]
    %v61 = vld [vmem:[#allocation2 + $0x1c] sm:$0xf]
    %v62 = vld [vmem:[#allocation2 + $0x20] sm:$0xf]
    %v63 = vld [vmem:[#allocation2 + $0x24] sm:$0xf]
    %v64 = vld [vmem:[#allocation2 + $0x28] sm:$0xf]
    %v65 = vld [vmem:[#allocation2 + $0x2c] sm:$0xf]
    %v66 = vld [vmem:[#allocation2 + $0x30] sm:$0xf]
    %v67 = vld [vmem:[#allocation2 + $0x34] sm:$0xf]
    %v68 = vld [vmem:[#allocation2 + $0x38] sm:$0xf]
    %v69 = vld [vmem:[#allocation2 + $0x3c] sm:$0xf]
    %v70 = vld [vmem:[%s2] sm:$0x1]
    %v72 = vperm.slane %v70, 0
    %v76 = vunpack.c.l.b16 %v52
    %v77 = vunpack.c.l.b16 %v53
    %v78 = vpack.c.b16 %v77, %v76
    %v96 = vunpack.c.l.b16 %v54
    %v97 = vunpack.c.l.b16 %v55
    %v98 = vunpack.c.l.b16 %v56
    %v99 = vunpack.c.l.b16 %v57
    %v100 = vunpack.c.l.b16 %v58
    %v101 = vunpack.c.l.b16 %v59
    %v102 = vunpack.c.l.b16 %v60
    %v103 = vunpack.c.l.b16 %v61
    %v104 = vunpack.c.l.b16 %v62
    %v105 = vunpack.c.l.b16 %v63
    %v106 = vunpack.c.l.b16 %v64
    %v107 = vunpack.c.l.b16 %v65
    %v108 = vunpack.c.l.b16 %v66
    %v109 = vunpack.c.l.b16 %v67
    %v110 = vunpack.c.l.b16 %v68
    %v111 = vunpack.c.l.b16 %v69
    %v112 = vpack.c.b16 %v97, %v96
    %v113 = vpack.c.b16 %v99, %v98
    %v114 = vpack.c.b16 %v101, %v100
    %v115 = vpack.c.b16 %v103, %v102
    %v116 = vpack.c.b16 %v105, %v104
    %v117 = vpack.c.b16 %v107, %v106
    %v118 = vpack.c.b16 %v109, %v108
    %v119 = vpack.c.b16 %v111, %v110
    %128 = vmatpush.bf16.msra.mxu0 %v119
    %129 = vmatpush.bf16.msra.mxu0 %v118
    %130 = vmatpush.bf16.msra.mxu0 %v117
    %131 = vmatpush.bf16.msra.mxu0 %v116
    %132 = vmatpush.bf16.msra.mxu0 %v115
    %133 = vmatpush.bf16.msra.mxu0 %v114
    %134 = vmatpush.bf16.msra.mxu0 %v113
    %135 = vmatpush.bf16.msra.mxu0 %v112
    %136 = vmatmul.bf16.gmra.mxu0 %v78
    %v137 = vpop.f32.mrf.mxu0
    %v138 = vadd.f32 %v72, %v137
    %v139 = vpop.f32.mrf.mxu0
    %v140 = vadd.f32 %v72, %v139
    %141 = vdwg.mxu0
    %v142 = vmax.f32 %v138, 0.0
    %v143 = vmax.f32 %v140, 0.0
    %v144 = vpack.c.bf16 %v143, %v142
    %v145 = vld [vmem:[#allocation4] sm:$0xf]
    %v146 = vld [vmem:[#allocation4 + $0x4] sm:$0xf]
    %v147 = vld [vmem:[#allocation4 + $0x8] sm:$0xf]
    %v148 = vld [vmem:[#allocation4 + $0xc] sm:$0xf]
    %v149 = vld [vmem:[#allocation4 + $0x10] sm:$0xf]
    %v150 = vld [vmem:[#allocation4 + $0x14] sm:$0xf]
    %v151 = vld [vmem:[#allocation4 + $0x18] sm:$0xf]
    %v152 = vld [vmem:[#allocation4 + $0x1c] sm:$0xf]
    %v153 = vld [vmem:[#allocation4 + $0x20] sm:$0xf]
    %v154 = vld [vmem:[#allocation4 + $0x24] sm:$0xf]
    %v155 = vld [vmem:[#allocation4 + $0x28] sm:$0xf]
    %v156 = vld [vmem:[#allocation4 + $0x2c] sm:$0xf]
    %v157 = vld [vmem:[#allocation4 + $0x30] sm:$0xf]
    %v158 = vld [vmem:[#allocation4 + $0x34] sm:$0xf]
    %v159 = vld [vmem:[#allocation4 + $0x38] sm:$0xf]
    %v160 = vld [vmem:[#allocation4 + $0x3c] sm:$0xf]
    %v161 = vld [vmem:[%s4] sm:$0x1]
    %v163 = vperm.slane %v161, 0
    %v181 = vunpack.c.l.b16 %v145
    %v182 = vunpack.c.l.b16 %v146
    %v183 = vunpack.c.l.b16 %v147
    %v184 = vunpack.c.l.b16 %v148
    %v185 = vunpack.c.l.b16 %v149
    %v186 = vunpack.c.l.b16 %v150
    %v187 = vunpack.c.l.b16 %v151
    %v188 = vunpack.c.l.b16 %v152
    %v189 = vunpack.c.l.b16 %v153
    %v190 = vunpack.c.l.b16 %v154
    %v191 = vunpack.c.l.b16 %v155
    %v192 = vunpack.c.l.b16 %v156
    %v193 = vunpack.c.l.b16 %v157
    %v194 = vunpack.c.l.b16 %v158
    %v195 = vunpack.c.l.b16 %v159
    %v196 = vunpack.c.l.b16 %v160
    %v197 = vpack.c.b16 %v182, %v181
    %v198 = vpack.c.b16 %v184, %v183
    %v199 = vpack.c.b16 %v186, %v185
    %v200 = vpack.c.b16 %v188, %v187
    %v201 = vpack.c.b16 %v190, %v189
    %v202 = vpack.c.b16 %v192, %v191
    %v203 = vpack.c.b16 %v194, %v193
    %v204 = vpack.c.b16 %v196, %v195
    %213 = vmatpush.bf16.msra.mxu0 %v204
    %214 = vmatpush.bf16.msra.mxu0 %v203
    %215 = vmatpush.bf16.msra.mxu0 %v202
    %216 = vmatpush.bf16.msra.mxu0 %v201
    %217 = vmatpush.bf16.msra.mxu0 %v200
    %218 = vmatpush.bf16.msra.mxu0 %v199
    %219 = vmatpush.bf16.msra.mxu0 %v198
    %220 = vmatpush.bf16.msra.mxu0 %v197
    %221 = vmatmul.bf16.gmra.mxu0 %v144
    %v222 = vpop.f32.mrf.mxu0
    %v223 = vadd.f32 %v163, %v222
    %v224 = vpop.f32.mrf.mxu0
    %v225 = vadd.f32 %v163, %v224
    %226 = vdwg.mxu0
    %v227 = vlaneseq
    %v228 = vshrl.u32 %v227, 7
    %v229 = vadd.s32 %v228, 8
    %vm230 = vcmp.lt.s32.totalorder %v228, 8
    %vm231 = vcmp.lt.s32.totalorder %v229, 8
    %v232 = vsel %vm230, %v223, -1e+30
    %v233 = vsel %vm231, %v225, -1e+30
    %v234 = vmax.f32 %v232, %v233
    %v235 = vrot.slane %v234, 4
    %v236 = vmax.f32 %v234, %v235
    %v237 = vrot.slane %v236, 2
    %v238 = vmax.f32 %v236, %v237
    %v239 = vrot.slane %v238, 1
    %v240 = vmax.f32 %v238, %v239
    %v241 = vsub.f32 %v232, %v240
    %v242 = vsub.f32 %v233, %v240
    %v243 = vmul.f32 %v241, 1.442695
    %v244 = vpow.pop %v243
    %v245 = vmul.f32 %v242, 1.442695
    %v246 = vpow.pop %v245
    %v247 = vadd.f32 %v244, %v246
    %v248 = vrot.slane %v247, 4
    %v249 = vadd.f32 %v247, %v248
    %v250 = vrot.slane %v249, 2
    %v251 = vadd.f32 %v249, %v250
    %v252 = vrot.slane %v251, 1
    %v253 = vadd.f32 %v251, %v252
    %v254 = vrcp.pop %v253
    %v255 = vmul.f32 %v253, %v254
    %v256 = vsub.f32 1.0, %v255
    %v257 = vmul.f32 %v254, %v256
    %v258 = vadd.f32 %v254, %v257
    %vm259 = vweird.f32 %v253
    %vm260 = vweird.f32 %v254
    %vm261 = vmor %vm259, %vm260
    %v262 = vsel %vm261, %v254, %v258
    %v263 = vand.u32 2147483647, %v253
    %vm264 = vcmp.eq.f32.partialorder %v263, 8.507059e+37
    %v265 = vand.u32 %v253, 2147483648
    %v266 = vor.u32 1.1754944e-38, %v265
    %v267 = vsel %vm264, %v266, %v262
    %v268 = vmul.f32 %v244, %v267
    %v269 = vmul.f32 %v246, %v267
    %270 = vst [vmem:[%s5] sm:$0xff] %v268
    %271 = vst [vmem:[%s5 + $0x8] sm:$0xff] %v269
    // Predicated region
    $region30: #{_forward_impl.1} parent=1 // pred_check
      _
    $region31: #{_forward_impl.1} parent=1 // pred_check_branch
      %273 = sbr.rel (0) target = $region33
    $region32: #{_forward_impl.1} parent=1 // pred_region
      _
    $region33: #{_forward_impl.1} parent=1 // pred_fallthru
      _
    // Predicated region
    $region34: #{_forward_impl.1} parent=1 // pred_check
      _
    $region35: #{_forward_impl.1} parent=1 // pred_check_branch
      %275 = sbr.rel (0) target = $region37
    $region36: #{_forward_impl.1} parent=1 // pred_region
      _
    $region37: #{_forward_impl.1} parent=1 // pred_fallthru
      _
    %276 = vsyncpa [#allocation3], 1
    %277 = vsyncpa [#allocation5], 1

</llo_original>
